<compile_context>
chip_gen: v7x
topology: tpu7x:2x2x1
jax: 0.10.0
libtpu: 0.0.40
codegen_flags: <defaults>
</compile_context>

<pallas_src>
import jax
import jax.numpy as jnp
from jax.experimental import pallas as pl
from jax.experimental.pallas import tpu as pltpu

LANE = 128      # hidden feature dims are zero-padded to the TPU lane width
SUBLANE = 8     # f32 sublane quantum (batch tiles are multiples of this)
TB_MAX = 512    # batch-tile cap (review: 512 gets ~85% of HBM roofline)


def _round_up(x, m):
    return ((x + m - 1) // m) * m


def _pick_tile(B):
    """Batch tile: sublane-aligned, capped at TB_MAX, and chosen so the grid
    has >= 2 steps whenever the batch allows (v7x has 2 TensorCores and the
    'parallel' axis only shards across them if the grid has >= 2 iterations)."""
    b8 = _round_up(max(B, 1), SUBLANE)
    if b8 <= 2 * TB_MAX:
        half = _round_up(pl.cdiv(b8, 2), SUBLANE)
        return max(SUBLANE, min(TB_MAX, half))
    return TB_MAX


def ae_kernel(x_ref,
              w1_ref, b1_ref,
              w23_ref, b23_ref,
              w4_ref, b4_ref,
              out_ref):
    """Fused forward pass for one batch tile:
         h = ReLU(x @ W1  + b1 )   # encoder Linear(64->32) + ReLU
         h = ReLU(h @ W23 + b23)   # folded enc-last/dec-first (32->8->32) + ReLU
         y =      h @ W4  + b4     # decoder Linear(32->64), no ReLU
       x is cast to bf16 in-kernel; MXU accumulates in f32; hidden lanes padded
       to 128 are exactly zero (zero weight cols / bias entries -> ReLU(0)=0)."""
    x = x_ref[...].astype(jnp.bfloat16)

    h = jnp.dot(x, w1_ref[...], preferred_element_type=jnp.float32)
    h = jnp.maximum(h + b1_ref[...], 0.0)

    h = jnp.dot(h.astype(jnp.bfloat16), w23_ref[...],
                preferred_element_type=jnp.float32)
    h = jnp.maximum(h + b23_ref[...], 0.0)

    h = jnp.dot(h.astype(jnp.bfloat16), w4_ref[...],
                preferred_element_type=jnp.float32)
    out_ref[...] = (h + b4_ref[...]).astype(out_ref.dtype)


def init_autoencoder_params(key, layers):
    """Deterministic params matching nn.Linear shapes; stored transposed as
    (in_features, out_features) so the kernel does x @ W directly.
    Returns [(W, b)] for: enc0, enc1, dec0, dec1 (3-entry `layers`)."""
    dims = []
    for i in range(len(layers) - 1):                 # encoder linears
        dims.append((layers[i], layers[i + 1]))
    rev = list(reversed(layers))
    for i in range(len(rev) - 1):                    # decoder linears
        dims.append((rev[i], rev[i + 1]))

    params = []
    for (din, dout) in dims:
        key, kw, kb = jax.random.split(key, 3)
        bound = 1.0 / jnp.sqrt(jnp.float32(din))
        w = jax.random.uniform(kw, (din, dout), jnp.float32, -bound, bound)
        b = jax.random.uniform(kb, (1, dout), jnp.float32, -bound, bound)
        params.append((w, b))
    return params


def fold_and_pad_params(params):
    """Fold encoder-last @ decoder-first (valid: no ReLU between them and
    Autoencoder1D.forward never exposes the latent), then pad ONLY the hidden
    (32-wide) dims to 128 lanes. din of W1 (=64, matches x's full last dim) and
    dout of W4 (=64, matches the output's full last dim) stay unpadded.
    Weights -> bf16 (MXU operands); biases stay f32 (added post-accumulation)."""
    (w1, b1), (w2, b2), (w3, b3), (w4, b4) = params
    w23 = w2 @ w3                       # (32, 32), folded in f32
    b23 = b2 @ w3 + b3                  # (1, 32)

    dhid = _round_up(w1.shape[1], LANE)                     # 32 -> 128

    w1p = jnp.pad(w1, ((0, 0), (0, dhid - w1.shape[1]))).astype(jnp.bfloat16)
    b1p = jnp.pad(b1, ((0, 0), (0, dhid - b1.shape[1]))).astype(jnp.float32)
    w23p = jnp.pad(w23, ((0, dhid - w23.shape[0]),
                         (0, dhid - w23.shape[1]))).astype(jnp.bfloat16)
    b23p = jnp.pad(b23, ((0, 0), (0, dhid - b23.shape[1]))).astype(jnp.float32)
    w4p = jnp.pad(w4, ((0, dhid - w4.shape[0]), (0, 0))).astype(jnp.bfloat16)
    b4p = b4.astype(jnp.float32)
    return [(w1p, b1p), (w23p, b23p), (w4p, b4p)]


@jax.jit
def autoencoder_forward(x, prepared):
    """x: (B, 64) f32, unpadded. `prepared` = fold_and_pad_params(params).
    Returns (B, 64) f32 (exact logical shape; no post-slice)."""
    (w1, b1), (w23, b23), (w4, b4) = prepared
    B, D = x.shape
    Dhid = w1.shape[1]        # 128 (padded hidden width)
    Dout = w4.shape[1]        # 64  (unpadded output width)

    tb = _pick_tile(B)
    grid = pl.cdiv(B, tb)     # ragged last tile handled by masked writeback
    # NOTE: for grid == 1 tiny batches a plain-XLA dot chain would avoid the
    # fixed Mosaic dispatch cost; kept on the Pallas path here so the demo
    # exercises the kernel.

    flops = 2 * B * (D * Dhid + Dhid * Dhid + Dhid * Dout)
    bytes_accessed = (x.size * x.dtype.itemsize
                      + B * Dout * 4
                      + sum(a.size * a.dtype.itemsize
                            for pair in prepared for a in pair))

    out = pl.pallas_call(
        ae_kernel,
        out_shape=jax.ShapeDtypeStruct((B, Dout), jnp.float32),
        grid=(grid,),
        in_specs=[
            pl.BlockSpec((tb, D), lambda i: (i, 0)),         # x tile (pipelined)
            pl.BlockSpec(w1.shape, lambda i: (0, 0)),        # weights/biases are
            pl.BlockSpec(b1.shape, lambda i: (0, 0)),        # resident (constant
            pl.BlockSpec(w23.shape, lambda i: (0, 0)),       # block index)
            pl.BlockSpec(b23.shape, lambda i: (0, 0)),
            pl.BlockSpec(w4.shape, lambda i: (0, 0)),
            pl.BlockSpec(b4.shape, lambda i: (0, 0)),
        ],
        out_specs=pl.BlockSpec((tb, Dout), lambda i: (i, 0)),
        compiler_params=pltpu.CompilerParams(
            dimension_semantics=("parallel",),
            vmem_limit_bytes=32 * 1024 * 1024,   # tb=512 footprint is ~1 MiB
        ),
        cost_estimate=pl.CostEstimate(
            flops=flops, transcendentals=0, bytes_accessed=bytes_accessed),
    )(x, w1, b1, w23, b23, w4, b4)

    return out


def reference_forward(x, params):
    """Pure-JAX f32 reference of the PyTorch forward (unfolded, unpadded)."""
    (w1, b1), (w2, b2), (w3, b3), (w4, b4) = params
    h = jnp.maximum(x @ w1 + b1, 0.0)
    h = h @ w2 + b2
    h = jnp.maximum(h @ w3 + b3, 0.0)
    h = h @ w4 + b4
    return h


if __name__ == "__main__":
    layers = [64, 32, 8]      # Autoencoder1D(layers=[64, 32, 8])

    key = jax.random.PRNGKey(0)
    kx, kx2, kp = jax.random.split(key, 3)
    params = init_autoencoder_params(kp, layers)
    prepared = fold_and_pad_params(params)   # fold + pad + bf16 cast (once)

    # Primary small-shape check (grid == 1).
    batch = 8
    x = jax.random.normal(kx, (batch, layers[0]), dtype=jnp.float32)
    decoded = jax.block_until_ready(autoencoder_forward(x, prepared))
    ref = reference_forward(x, params)
    assert decoded.shape == (batch, layers[0])
    err = float(jnp.max(jnp.abs(decoded - ref)))
    assert jnp.allclose(decoded, ref, atol=2e-2, rtol=2e-2), err

    # Secondary check: multi-step grid with a ragged last batch tile
    # (exercises masked writeback on B not divisible by tb).
    batch2 = 40
    x2 = jax.random.normal(kx2, (batch2, layers[0]), dtype=jnp.float32)
    decoded2 = jax.block_until_ready(autoencoder_forward(x2, prepared))
    ref2 = reference_forward(x2, params)
    assert decoded2.shape == (batch2, layers[0])
    err2 = float(jnp.max(jnp.abs(decoded2 - ref2)))
    assert jnp.allclose(decoded2, ref2, atol=2e-2, rtol=2e-2), err2

    print("KERNEL_OK")
</pallas_src>

<mosaic_0001>
module attributes {stable_mosaic.version = 11 : i64} {
  func.func @ae_kernel(%arg0: i32, %arg1: memref<8x64xf32, #tpu.memory_space<vmem>>, %arg2: memref<64x128xbf16, #tpu.memory_space<vmem>>, %arg3: memref<1x128xf32, #tpu.memory_space<vmem>>, %arg4: memref<128x128xbf16, #tpu.memory_space<vmem>>, %arg5: memref<1x128xf32, #tpu.memory_space<vmem>>, %arg6: memref<128x64xbf16, #tpu.memory_space<vmem>>, %arg7: memref<1x64xf32, #tpu.memory_space<vmem>>, %arg8: memref<8x64xf32, #tpu.memory_space<vmem>>) attributes {dimension_semantics = [#tpu.dimension_semantics<parallel>], iteration_bounds = array<i64: 1>, scalar_prefetch = 0 : i64, scratch_operands = 0 : i64, tpu.core_type = #tpu.core_type<tc>, window_params = [{transform_indices = @transform_0, window_bounds = array<i64: 8, 64>}, {pipeline_mode = #tpu.pipeline_mode<synchronous>, transform_indices = @transform_1, window_bounds = array<i64: 64, 128>}, {pipeline_mode = #tpu.pipeline_mode<synchronous>, transform_indices = @transform_2, window_bounds = array<i64: 1, 128>}, {pipeline_mode = #tpu.pipeline_mode<synchronous>, transform_indices = @transform_3, window_bounds = array<i64: 128, 128>}, {pipeline_mode = #tpu.pipeline_mode<synchronous>, transform_indices = @transform_4, window_bounds = array<i64: 1, 128>}, {pipeline_mode = #tpu.pipeline_mode<synchronous>, transform_indices = @transform_5, window_bounds = array<i64: 128, 64>}, {pipeline_mode = #tpu.pipeline_mode<synchronous>, transform_indices = @transform_6, window_bounds = array<i64: 1, 64>}, {transform_indices = @transform_7, window_bounds = array<i64: 8, 64>}]} {
    %c0 = arith.constant 0 : index
    %c0_0 = arith.constant 0 : index
    %0 = vector.load %arg1[%c0, %c0_0] : memref<8x64xf32, #tpu.memory_space<vmem>>, vector<8x64xf32>
    %1 = arith.truncf %0 : vector<8x64xf32> to vector<8x64xbf16>
    %c0_1 = arith.constant 0 : index
    %c0_2 = arith.constant 0 : index
    %2 = vector.load %arg2[%c0_1, %c0_2] : memref<64x128xbf16, #tpu.memory_space<vmem>>, vector<64x128xbf16>
    %cst = arith.constant dense<0.000000e+00> : vector<8x128xf32>
    %3 = tpu.matmul %1, %2, %cst {dimension_numbers = #tpu.dot_dimension_numbers<[1], [0], [0], [1], [0, 0, 1, 1], [], []>} : vector<8x64xbf16>, vector<64x128xbf16>, vector<8x128xf32> -> vector<8x128xf32>
    %c0_3 = arith.constant 0 : index
    %c0_4 = arith.constant 0 : index
    %4 = vector.load %arg3[%c0_3, %c0_4] : memref<1x128xf32, #tpu.memory_space<vmem>>, vector<1x128xf32>
    %5 = vector.broadcast %4 : vector<1x128xf32> to vector<8x128xf32>
    %6 = arith.addf %3, %5 : vector<8x128xf32>
    %cst_5 = arith.constant 0.000000e+00 : f32
    %7 = vector.broadcast %cst_5 : f32 to vector<8x128xf32>
    %8 = arith.maximumf %6, %7 : vector<8x128xf32>
    %9 = arith.truncf %8 : vector<8x128xf32> to vector<8x128xbf16>
    %c0_6 = arith.constant 0 : index
    %c0_7 = arith.constant 0 : index
    %10 = vector.load %arg4[%c0_6, %c0_7] : memref<128x128xbf16, #tpu.memory_space<vmem>>, vector<128x128xbf16>
    %cst_8 = arith.constant dense<0.000000e+00> : vector<8x128xf32>
    %11 = tpu.matmul %9, %10, %cst_8 {dimension_numbers = #tpu.dot_dimension_numbers<[1], [0], [0], [1], [0, 0, 1, 1], [], []>} : vector<8x128xbf16>, vector<128x128xbf16>, vector<8x128xf32> -> vector<8x128xf32>
    %c0_9 = arith.constant 0 : index
    %c0_10 = arith.constant 0 : index
    %12 = vector.load %arg5[%c0_9, %c0_10] : memref<1x128xf32, #tpu.memory_space<vmem>>, vector<1x128xf32>
    %13 = vector.broadcast %12 : vector<1x128xf32> to vector<8x128xf32>
    %14 = arith.addf %11, %13 : vector<8x128xf32>
    %cst_11 = arith.constant 0.000000e+00 : f32
    %15 = vector.broadcast %cst_11 : f32 to vector<8x128xf32>
    %16 = arith.maximumf %14, %15 : vector<8x128xf32>
    %17 = arith.truncf %16 : vector<8x128xf32> to vector<8x128xbf16>
    %c0_12 = arith.constant 0 : index
    %c0_13 = arith.constant 0 : index
    %18 = vector.load %arg6[%c0_12, %c0_13] : memref<128x64xbf16, #tpu.memory_space<vmem>>, vector<128x64xbf16>
    %cst_14 = arith.constant dense<0.000000e+00> : vector<8x64xf32>
    %19 = tpu.matmul %17, %18, %cst_14 {dimension_numbers = #tpu.dot_dimension_numbers<[1], [0], [0], [1], [0, 0, 1, 1], [], []>} : vector<8x128xbf16>, vector<128x64xbf16>, vector<8x64xf32> -> vector<8x64xf32>
    %c0_15 = arith.constant 0 : index
    %c0_16 = arith.constant 0 : index
    %20 = vector.load %arg7[%c0_15, %c0_16] : memref<1x64xf32, #tpu.memory_space<vmem>>, vector<1x64xf32>
    %21 = vector.broadcast %20 : vector<1x64xf32> to vector<8x64xf32>
    %22 = arith.addf %19, %21 : vector<8x64xf32>
    %c0_17 = arith.constant 0 : index
    %c0_18 = arith.constant 0 : index
    %23 = vector.load %arg8[%c0_17, %c0_18] : memref<8x64xf32, #tpu.memory_space<vmem>>, vector<8x64xf32>
    tpu.vector_store %arg8[%c0_17, %c0_18], %22 {strides = array<i32>} : memref<8x64xf32, #tpu.memory_space<vmem>>, vector<8x64xf32>,
    return
  }
  func.func @transform_0(%arg0: i32) -> (i32, i32) {
    %c0_i32 = arith.constant 0 : i32
    %c0_i32_0 = arith.constant 0 : i32
    return %arg0, %c0_i32 : i32, i32
  }
  func.func @transform_1(%arg0: i32) -> (i32, i32) {
    %c0_i32 = arith.constant 0 : i32
    %c0_i32_0 = arith.constant 0 : i32
    %c0_i32_1 = arith.constant 0 : i32
    return %c0_i32, %c0_i32_0 : i32, i32
  }
  func.func @transform_2(%arg0: i32) -> (i32, i32) {
    %c0_i32 = arith.constant 0 : i32
    %c0_i32_0 = arith.constant 0 : i32
    %c0_i32_1 = arith.constant 0 : i32
    return %c0_i32, %c0_i32_0 : i32, i32
  }
  func.func @transform_3(%arg0: i32) -> (i32, i32) {
    %c0_i32 = arith.constant 0 : i32
    %c0_i32_0 = arith.constant 0 : i32
    %c0_i32_1 = arith.constant 0 : i32
    return %c0_i32, %c0_i32_0 : i32, i32
  }
  func.func @transform_4(%arg0: i32) -> (i32, i32) {
    %c0_i32 = arith.constant 0 : i32
    %c0_i32_0 = arith.constant 0 : i32
    %c0_i32_1 = arith.constant 0 : i32
    return %c0_i32, %c0_i32_0 : i32, i32
  }
  func.func @transform_5(%arg0: i32) -> (i32, i32) {
    %c0_i32 = arith.constant 0 : i32
    %c0_i32_0 = arith.constant 0 : i32
    %c0_i32_1 = arith.constant 0 : i32
    return %c0_i32, %c0_i32_0 : i32, i32
  }
  func.func @transform_6(%arg0: i32) -> (i32, i32) {
    %c0_i32 = arith.constant 0 : i32
    %c0_i32_0 = arith.constant 0 : i32
    %c0_i32_1 = arith.constant 0 : i32
    return %c0_i32, %c0_i32_0 : i32, i32
  }
  func.func @transform_7(%arg0: i32) -> (i32, i32) {
    %c0_i32 = arith.constant 0 : i32
    %c0_i32_0 = arith.constant 0 : i32
    return %arg0, %c0_i32 : i32, i32
  }
}

</mosaic_0001>

<llo_original>
// kernel: autoencoder_forward.1
$region0: #{autoencoder_forward.1}
  #allocation0 [shape = 'u32[]', space=smem, size = 0x4, offset = 0x4, fixed_abs, tag = 'smem constant byte address 0x4 - core index']
  #allocation1 [shape = 'u32[144,128]{1,0:T(1,128)}', space=vmem, size = 0x12000, scoped, tag = 'internal scratch']
  %s0 = inlined_call_operand.vmem [shape: f32[8,64], index: 0, kind: input, shape index: {}]
  %s1 = inlined_call_operand.vmem [shape: bf16[64,128], index: 1, kind: input, shape index: {}]
  %s2 = inlined_call_operand.vmem [shape: f32[1,128], index: 2, kind: input, shape index: {}]
  %s3 = inlined_call_operand.vmem [shape: bf16[128,128], index: 3, kind: input, shape index: {}]
  %s4 = inlined_call_operand.vmem [shape: f32[1,128], index: 4, kind: input, shape index: {}]
  %s5 = inlined_call_operand.vmem [shape: bf16[128,64], index: 5, kind: input, shape index: {}]
  %s6 = inlined_call_operand.vmem [shape: f32[1,64], index: 6, kind: input, shape index: {}]
  %s7 = inlined_call_operand.hbm [shape: f32[8,64], index: 7, kind: output, shape index: {}]
  %s8 = sld [smem:[#allocation0]]
  $region38: #{autoencoder_forward.1} parent=0
    _
  %s10 = ssub.s32 1, %s8
  %s11 = scalar_select 0, %s10, %s8
  $region1: #{autoencoder_forward.1} parent=0
    #allocation2 [shape = 'u8[4096]{0}', space=vmem, size = 0x1000, scoped, tag = 'output window, operand 0, single buffered']
    #allocation3 [shape = 's32[1]{0}', space=sflag, size = 0x4, scoped, tag = 'scoped memory for autoencoder_forward.1']
    %12 = vsyncpa [#allocation3], 0
    // Predicated region
    $region2: #{autoencoder_forward.1} parent=1 // pred_check
      _
    $region3: #{autoencoder_forward.1} parent=1 // pred_check_branch
      %14 = sbr.rel (0) target = $region5
    $region4: #{autoencoder_forward.1} parent=1 // pred_region
      _
    $region5: #{autoencoder_forward.1} parent=1 // pred_fallthru
      _
    // Predicated region
    $region6: #{autoencoder_forward.1} parent=1 // pred_check
      _
    $region7: #{autoencoder_forward.1} parent=1 // pred_check_branch
      %16 = sbr.rel (0) target = $region9
    $region8: #{autoencoder_forward.1} parent=1 // pred_region
      _
    $region9: #{autoencoder_forward.1} parent=1 // pred_fallthru
      _
    // Predicated region
    $region10: #{autoencoder_forward.1} parent=1 // pred_check
      _
    $region11: #{autoencoder_forward.1} parent=1 // pred_check_branch
      %18 = sbr.rel (0) target = $region13
    $region12: #{autoencoder_forward.1} parent=1 // pred_region
      _
    $region13: #{autoencoder_forward.1} parent=1 // pred_fallthru
      _
    // Predicated region
    $region14: #{autoencoder_forward.1} parent=1 // pred_check
      _
    $region15: #{autoencoder_forward.1} parent=1 // pred_check_branch
      %20 = sbr.rel (0) target = $region17
    $region16: #{autoencoder_forward.1} parent=1 // pred_region
      _
    $region17: #{autoencoder_forward.1} parent=1 // pred_fallthru
      _
    // Predicated region
    $region18: #{autoencoder_forward.1} parent=1 // pred_check
      _
    $region19: #{autoencoder_forward.1} parent=1 // pred_check_branch
      %22 = sbr.rel (0) target = $region21
    $region20: #{autoencoder_forward.1} parent=1 // pred_region
      _
    $region21: #{autoencoder_forward.1} parent=1 // pred_fallthru
      _
    // Predicated region
    $region22: #{autoencoder_forward.1} parent=1 // pred_check
      _
    $region23: #{autoencoder_forward.1} parent=1 // pred_check_branch
      %24 = sbr.rel (0) target = $region25
    $region24: #{autoencoder_forward.1} parent=1 // pred_region
      _
    $region25: #{autoencoder_forward.1} parent=1 // pred_fallthru
      _
    // Predicated region
    $region26: #{autoencoder_forward.1} parent=1 // pred_check
      _
    $region27: #{autoencoder_forward.1} parent=1 // pred_check_branch
      %26 = sbr.rel (0) target = $region29
    $region28: #{autoencoder_forward.1} parent=1 // pred_region
      _
    $region29: #{autoencoder_forward.1} parent=1 // pred_fallthru
      _
    %v28 = vld [vmem:[%s0] sm:$0xff]
    %v29 = vpack.c.bf16 %v28, %v28
    %v30 = vld [vmem:[%s1] sm:$0xf]
    %v31 = vld [vmem:[%s1 + $0x4] sm:$0xf]
    %v32 = vld [vmem:[%s1 + $0x8] sm:$0xf]
    %v33 = vld [vmem:[%s1 + $0xc] sm:$0xf]
    %v34 = vld [vmem:[%s1 + $0x10] sm:$0xf]
    %v35 = vld [vmem:[%s1 + $0x14] sm:$0xf]
    %v36 = vld [vmem:[%s1 + $0x18] sm:$0xf]
    %v37 = vld [vmem:[%s1 + $0x1c] sm:$0xf]
    %v38 = vld [vmem:[%s2] sm:$0x1]
    %v40 = vlaneseq
    %v41 = vshrl.u32 %v40, 7
    %v42 = vsub.s32 0, %v41
    %v43 = vrot.slane %v38, %v42
    %v53 = vunpack.c.l.b16 %v30
    %v54 = vunpack.c.l.b16 %v31
    %v55 = vunpack.c.l.b16 %v32
    %v56 = vunpack.c.l.b16 %v33
    %v57 = vunpack.c.l.b16 %v34
    %v58 = vunpack.c.l.b16 %v35
    %v59 = vunpack.c.l.b16 %v36
    %v60 = vunpack.c.l.b16 %v37
    %v61 = vpack.c.b16 %v54, %v53
    %v62 = vpack.c.b16 %v56, %v55
    %v63 = vpack.c.b16 %v58, %v57
    %v64 = vpack.c.b16 %v60, %v59
    %vm69 = vcmask 523264
    %v71 = vsel %vm69, %v29, 0
    %73 = vmatprep.subr.bf16.mxu0 0
    %74 = vmatpush1.bf16.msra.mxu0 %v61
    %75 = vmatprep.subr.bf16.mxu0 0
    %76 = vmatpush1.bf16.msra.mxu0 %v62
    %77 = vmatprep.subr.bf16.mxu0 0
    %78 = vmatpush1.bf16.msra.mxu0 %v63
    %79 = vmatprep.subr.bf16.mxu0 0
    %80 = vmatpush1.bf16.msra.mxu0 %v64
    %81 = vmatprep.subr.bf16.mxu0 0
    %82 = vmatpush1.bf16.msra.mxu0 0
    %83 = vmatprep.subr.bf16.mxu0 0
    %84 = vmatpush1.bf16.msra.mxu0 0
    %85 = vmatprep.subr.bf16.mxu0 0
    %86 = vmatpush1.bf16.msra.mxu0 0
    %87 = vmatprep.subr.bf16.mxu0 0
    %88 = vmatpush1.bf16.msra.mxu0 0
    %89 = vmatprep.subr.bf16.mxu0 0
    %90 = vmatpush1.bf16.msra.mxu0 0
    %91 = vmatprep.subr.bf16.mxu0 0
    %92 = vmatpush1.bf16.msra.mxu0 0
    %93 = vmatprep.subr.bf16.mxu0 0
    %94 = vmatpush1.bf16.msra.mxu0 0
    %95 = vmatprep.subr.bf16.mxu0 0
    %96 = vmatpush1.bf16.msra.mxu0 0
    %97 = vmatprep.subr.bf16.mxu0 0
    %98 = vmatpush1.bf16.msra.mxu0 0
    %99 = vmatprep.subr.bf16.mxu0 0
    %100 = vmatpush1.bf16.msra.mxu0 0
    %101 = vmatprep.subr.bf16.mxu0 0
    %102 = vmatpush1.bf16.msra.mxu0 0
    %103 = vmatprep.subr.bf16.mxu0 0
    %104 = vmatpush1.bf16.msra.mxu0 0
    %105 = vmatprep.mubr.bf16.mxu0 0
    %106 = vmatmul.mubr.bf16.gmra.mrb[0].mxu0 %v71
    %v107 = vpop.f32.mrb[0].mxu0
    %v108 = vadd.f32 %v43, %v107
    %v109 = vpop.f32.mrb[0].mxu0
    %v110 = vpop.f32.mrb[0].mxu0
    %v111 = vpop.f32.mrb[0].mxu0
    %112 = vdwg.mxu0
    %v113 = vmax.f32 %v108, 0.0
    %v114 = vpack.c.bf16 %v113, %v113
    %v115 = vld [vmem:[%s3] sm:$0xf]
    %v116 = vld [vmem:[%s3 + $0x4] sm:$0xf]
    %v117 = vld [vmem:[%s3 + $0x8] sm:$0xf]
    %v118 = vld [vmem:[%s3 + $0xc] sm:$0xf]
    %v119 = vld [vmem:[%s3 + $0x10] sm:$0xf]
    %v120 = vld [vmem:[%s3 + $0x14] sm:$0xf]
    %v121 = vld [vmem:[%s3 + $0x18] sm:$0xf]
    %v122 = vld [vmem:[%s3 + $0x1c] sm:$0xf]
    %v123 = vld [vmem:[%s3 + $0x20] sm:$0xf]
    %v124 = vld [vmem:[%s3 + $0x24] sm:$0xf]
    %v125 = vld [vmem:[%s3 + $0x28] sm:$0xf]
    %v126 = vld [vmem:[%s3 + $0x2c] sm:$0xf]
    %v127 = vld [vmem:[%s3 + $0x30] sm:$0xf]
    %v128 = vld [vmem:[%s3 + $0x34] sm:$0xf]
    %v129 = vld [vmem:[%s3 + $0x38] sm:$0xf]
    %v130 = vld [vmem:[%s3 + $0x3c] sm:$0xf]
    %v131 = vld [vmem:[%s4] sm:$0x1]
    %v133 = vlaneseq
    %v134 = vshrl.u32 %v133, 7
    %v135 = vsub.s32 0, %v134
    %v136 = vrot.slane %v131, %v135
    %v154 = vunpack.c.l.b16 %v115
    %v155 = vunpack.c.l.b16 %v116
    %v156 = vunpack.c.l.b16 %v117
    %v157 = vunpack.c.l.b16 %v118
    %v158 = vunpack.c.l.b16 %v119
    %v159 = vunpack.c.l.b16 %v120
    %v160 = vunpack.c.l.b16 %v121
    %v161 = vunpack.c.l.b16 %v122
    %v162 = vunpack.c.l.b16 %v123
    %v163 = vunpack.c.l.b16 %v124
    %v164 = vunpack.c.l.b16 %v125
    %v165 = vunpack.c.l.b16 %v126
    %v166 = vunpack.c.l.b16 %v127
    %v167 = vunpack.c.l.b16 %v128
    %v168 = vunpack.c.l.b16 %v129
    %v169 = vunpack.c.l.b16 %v130
    %v170 = vpack.c.b16 %v155, %v154
    %v171 = vpack.c.b16 %v157, %v156
    %v172 = vpack.c.b16 %v159, %v158
    %v173 = vpack.c.b16 %v161, %v160
    %v174 = vpack.c.b16 %v163, %v162
    %v175 = vpack.c.b16 %v165, %v164
    %v176 = vpack.c.b16 %v167, %v166
    %v177 = vpack.c.b16 %v169, %v168
    %186 = vmatprep.subr.bf16.mxu0 0
    %187 = vmatpush1.bf16.msra.mxu0 %v170
    %188 = vmatprep.subr.bf16.mxu0 0
    %189 = vmatpush1.bf16.msra.mxu0 %v171
    %190 = vmatprep.subr.bf16.mxu0 0
    %191 = vmatpush1.bf16.msra.mxu0 %v172
    %192 = vmatprep.subr.bf16.mxu0 0
    %193 = vmatpush1.bf16.msra.mxu0 %v173
    %194 = vmatprep.subr.bf16.mxu0 0
    %195 = vmatpush1.bf16.msra.mxu0 %v174
    %196 = vmatprep.subr.bf16.mxu0 0
    %197 = vmatpush1.bf16.msra.mxu0 %v175
    %198 = vmatprep.subr.bf16.mxu0 0
    %199 = vmatpush1.bf16.msra.mxu0 %v176
    %200 = vmatprep.subr.bf16.mxu0 0
    %201 = vmatpush1.bf16.msra.mxu0 %v177
    %202 = vmatprep.subr.bf16.mxu0 0
    %203 = vmatpush1.bf16.msra.mxu0 0
    %204 = vmatprep.subr.bf16.mxu0 0
    %205 = vmatpush1.bf16.msra.mxu0 0
    %206 = vmatprep.subr.bf16.mxu0 0
    %207 = vmatpush1.bf16.msra.mxu0 0
    %208 = vmatprep.subr.bf16.mxu0 0
    %209 = vmatpush1.bf16.msra.mxu0 0
    %210 = vmatprep.subr.bf16.mxu0 0
    %211 = vmatpush1.bf16.msra.mxu0 0
    %212 = vmatprep.subr.bf16.mxu0 0
    %213 = vmatpush1.bf16.msra.mxu0 0
    %214 = vmatprep.subr.bf16.mxu0 0
    %215 = vmatpush1.bf16.msra.mxu0 0
    %216 = vmatprep.subr.bf16.mxu0 0
    %217 = vmatpush1.bf16.msra.mxu0 0
    %218 = vmatprep.mubr.bf16.mxu0 0
    %219 = vmatmul.mubr.bf16.gmra.mrb[0].mxu0 %v114
    %v220 = vpop.f32.mrb[0].mxu0
    %v221 = vadd.f32 %v136, %v220
    %v222 = vpop.f32.mrb[0].mxu0
    %v223 = vpop.f32.mrb[0].mxu0
    %v224 = vpop.f32.mrb[0].mxu0
    %225 = vdwg.mxu0
    %v226 = vmax.f32 %v221, 0.0
    %v227 = vpack.c.bf16 %v226, %v226
    %v228 = vld [vmem:[%s5] sm:$0xf]
    %v229 = vld [vmem:[%s5 + $0x4] sm:$0xf]
    %v230 = vld [vmem:[%s5 + $0x8] sm:$0xf]
    %v231 = vld [vmem:[%s5 + $0xc] sm:$0xf]
    %v232 = vld [vmem:[%s5 + $0x10] sm:$0xf]
    %v233 = vld [vmem:[%s5 + $0x14] sm:$0xf]
    %v234 = vld [vmem:[%s5 + $0x18] sm:$0xf]
    %v235 = vld [vmem:[%s5 + $0x1c] sm:$0xf]
    %v236 = vld [vmem:[%s5 + $0x20] sm:$0xf]
    %v237 = vld [vmem:[%s5 + $0x24] sm:$0xf]
    %v238 = vld [vmem:[%s5 + $0x28] sm:$0xf]
    %v239 = vld [vmem:[%s5 + $0x2c] sm:$0xf]
    %v240 = vld [vmem:[%s5 + $0x30] sm:$0xf]
    %v241 = vld [vmem:[%s5 + $0x34] sm:$0xf]
    %v242 = vld [vmem:[%s5 + $0x38] sm:$0xf]
    %v243 = vld [vmem:[%s5 + $0x3c] sm:$0xf]
    %v244 = vld [vmem:[%s6] sm:$0x1]
    %v246 = vlaneseq
    %v247 = vshrl.u32 %v246, 7
    %v248 = vsub.s32 0, %v247
    %v249 = vrot.slane %v244, %v248
    %v267 = vunpack.c.l.b16 %v228
    %v268 = vunpack.c.l.b16 %v229
    %v269 = vunpack.c.l.b16 %v230
    %v270 = vunpack.c.l.b16 %v231
    %v271 = vunpack.c.l.b16 %v232
    %v272 = vunpack.c.l.b16 %v233
    %v273 = vunpack.c.l.b16 %v234
    %v274 = vunpack.c.l.b16 %v235
    %v275 = vunpack.c.l.b16 %v236
    %v276 = vunpack.c.l.b16 %v237
    %v277 = vunpack.c.l.b16 %v238
    %v278 = vunpack.c.l.b16 %v239
    %v279 = vunpack.c.l.b16 %v240
    %v280 = vunpack.c.l.b16 %v241
    %v281 = vunpack.c.l.b16 %v242
    %v282 = vunpack.c.l.b16 %v243
    %v283 = vpack.c.b16 %v268, %v267
    %v284 = vpack.c.b16 %v270, %v269
    %v285 = vpack.c.b16 %v272, %v271
    %v286 = vpack.c.b16 %v274, %v273
    %v287 = vpack.c.b16 %v276, %v275
    %v288 = vpack.c.b16 %v278, %v277
    %v289 = vpack.c.b16 %v280, %v279
    %v290 = vpack.c.b16 %v282, %v281
    %299 = vmatprep.subr.bf16.mxu0 0
    %300 = vmatpush1.bf16.msra.mxu0 %v283
    %301 = vmatprep.subr.bf16.mxu0 0
    %302 = vmatpush1.bf16.msra.mxu0 %v284
    %303 = vmatprep.subr.bf16.mxu0 0
    %304 = vmatpush1.bf16.msra.mxu0 %v285
    %305 = vmatprep.subr.bf16.mxu0 0
    %306 = vmatpush1.bf16.msra.mxu0 %v286
    %307 = vmatprep.subr.bf16.mxu0 0
    %308 = vmatpush1.bf16.msra.mxu0 %v287
    %309 = vmatprep.subr.bf16.mxu0 0
    %310 = vmatpush1.bf16.msra.mxu0 %v288
    %311 = vmatprep.subr.bf16.mxu0 0
    %312 = vmatpush1.bf16.msra.mxu0 %v289
    %313 = vmatprep.subr.bf16.mxu0 0
    %314 = vmatpush1.bf16.msra.mxu0 %v290
    %315 = vmatprep.subr.bf16.mxu0 0
    %316 = vmatpush1.bf16.msra.mxu0 0
    %317 = vmatprep.subr.bf16.mxu0 0
    %318 = vmatpush1.bf16.msra.mxu0 0
    %319 = vmatprep.subr.bf16.mxu0 0
    %320 = vmatpush1.bf16.msra.mxu0 0
    %321 = vmatprep.subr.bf16.mxu0 0
    %322 = vmatpush1.bf16.msra.mxu0 0
    %323 = vmatprep.subr.bf16.mxu0 0
    %324 = vmatpush1.bf16.msra.mxu0 0
    %325 = vmatprep.subr.bf16.mxu0 0
    %326 = vmatpush1.bf16.msra.mxu0 0
    %327 = vmatprep.subr.bf16.mxu0 0
    %328 = vmatpush1.bf16.msra.mxu0 0
    %329 = vmatprep.subr.bf16.mxu0 0
    %330 = vmatpush1.bf16.msra.mxu0 0
    %331 = vmatprep.mubr.bf16.mxu0 0
    %332 = vmatmul.mubr.bf16.gmra.mrb[0].mxu0 %v227
    %v333 = vpop.f32.mrb[0].mxu0
    %v334 = vadd.f32 %v249, %v333
    %v335 = vpop.f32.mrb[0].mxu0
    %v336 = vpop.f32.mrb[0].mxu0
    %v337 = vpop.f32.mrb[0].mxu0
    %338 = vdwg.mxu0
    %339 = vst.msk [vmem:[#allocation2] sm:$0xff] %vm69, %v334
    // Predicated region
    $region30: #{autoencoder_forward.1} parent=1 // pred_check
      _
    $region31: #{autoencoder_forward.1} parent=1 // pred_check_branch
      %341 = sbr.rel (0) target = $region33
    $region32: #{autoencoder_forward.1} parent=1 // pred_region
      %s343 = ssub.s32 128, 128
      %344 = vsyncadd [#allocation3], %s343
      %s346 = sshll.u32 [#allocation2], 4
      %s347 = int_to_ptr.vmem [resolvable:$true] %s346
      %349 = dma.vmem_to_hbm [thread:$0]  %s347, 128, %s7, [#allocation3]
    $region33: #{autoencoder_forward.1} parent=1 // pred_fallthru
      _
    // Predicated region
    $region34: #{autoencoder_forward.1} parent=1 // pred_check
      _
    $region35: #{autoencoder_forward.1} parent=1 // pred_check_branch
      %351 = sbr.rel (0) target = $region37
    $region36: #{autoencoder_forward.1} parent=1 // pred_region
      %352 = dma.done [#allocation3], 128
    $region37: #{autoencoder_forward.1} parent=1 // pred_fallthru
      _
    %353 = vsyncpa [#allocation3], 1

</llo_original>
